<compile_context>
chip_gen: v7x
topology: tpu7x:2x2x1
jax: 0.10.0
libtpu: 0.0.40
codegen_flags: <defaults>
</compile_context>

<pallas_src>
import functools

import numpy as np
import jax
import jax.numpy as jnp
from jax import lax
from jax.experimental import pallas as pl
from jax.experimental.pallas import tpu as pltpu


def _build_cost(d: int, p: int) -> np.ndarray:
    """cost[i*d+j, k*d+l] = ((i-k)^2 + (j-l)^2)^(p/2) — matches the torch __init__ loop."""
    idx = np.arange(d)
    ii, jj = np.meshgrid(idx, idx, indexing="ij")
    coords = np.stack([ii.ravel(), jj.ravel()], axis=1).astype(np.float32)  # row i*d+j -> (i,j)
    diff = coords[:, None, :] - coords[None, :, :]
    cost = (diff[..., 0] ** 2 + diff[..., 1] ** 2) ** np.float32(p / 2.0)
    return cost.astype(np.float32)


@functools.lru_cache(maxsize=None)
def _tables(d: int, p: int, epsilon: float, use_bf16: bool):
    """Cached (K, M) tables per (d, p, epsilon).  M = K*C always stays f32."""
    cost = _build_cost(d, p)                                        # (n, n) f32
    kern = np.exp(-cost / np.float32(epsilon)).astype(np.float32)   # Gibbs kernel K
    m = (kern * cost).astype(np.float32)                            # M = K * C (f32)
    k_dtype = jnp.bfloat16 if use_bf16 else jnp.float32
    return jnp.asarray(kern, dtype=k_dtype), jnp.asarray(m)


def _vmem_cap_bytes() -> int:
    try:
        return int(pltpu.get_tpu_info().vmem_capacity_bytes)
    except Exception:
        return 64 << 20      # conservative fallback = v7x per-core VMEM


def _sinkhorn_kernel(x_ref, y_ref, k_hbm, m_hbm, out_ref, k_vmem, m_vmem, sem,
                     *, n, b_real, max_iter, tolerance, check_every, use_bf16):
    # Kick off both table DMAs immediately; K is needed before the loop, M only in the
    # epilogue, so M's transfer is hidden behind the Sinkhorn iterations.
    k_cp = pltpu.make_async_copy(k_hbm, k_vmem, sem.at[0])
    m_cp = pltpu.make_async_copy(m_hbm, m_vmem, sem.at[1])
    k_cp.start()
    m_cp.start()

    x = x_ref[...]                       # (bp, n) f32, padded rows are zero
    y = y_ref[...]                       # (bp, n) f32
    bp = x.shape[0]

    padded = bp != b_real
    if padded:
        row = lax.broadcasted_iota(jnp.int32, (bp, 1), 0)
        valid = (row < b_real).astype(jnp.float32)       # (bp, 1) mask of real rows

    u0 = jnp.full((bp, n), 1.0 / n, dtype=jnp.float32)
    v0 = jnp.full((bp, n), 1.0 / n, dtype=jnp.float32)

    # K is symmetric, so v @ K.T == v @ K: one contraction pattern serves both updates.
    dn = (((1,), (0,)), ((), ()))
    # Fold the batch-mean division into the threshold (trace-time scalar constant).
    tol_scaled = jnp.float32(tolerance * b_real)
    need_mask = (max_iter % check_every) != 0

    k_cp.wait()
    K = k_vmem[...]                      # (n, n), bf16 or f32

    def matvec(a, k):
        lhs = a.astype(jnp.bfloat16) if use_bf16 else a
        return lax.dot_general(lhs, k, dn, preferred_element_type=jnp.float32)

    def cond(carry):
        it, _, _, err = carry
        return jnp.logical_and(it < max_iter, err >= tol_scaled)

    def body(carry):
        it, u, v, _ = carry
        pu, pv = u, v
        # `check_every` update pairs per while-step: amortizes the reduce->scalar convergence
        # check and gives the scheduler a larger ILP window.
        for s in range(check_every):
            if s == check_every - 1:
                pu, pv = u, v            # snapshot for the exact per-iteration delta
            un = x / (matvec(v, K) + 1e-8)      # u = x / (v @ K.T + 1e-8)  (K symmetric)
            vn = y / (matvec(un, K) + 1e-8)     # v = y / (u @ K   + 1e-8)
            if need_mask:
                do = (it + s) < max_iter        # never iterate past max_iter
                un = jnp.where(do, un, u)
                vn = jnp.where(do, vn, v)
            u, v = un, vn
        # torch: ((u - pu).abs() + (v - pv).abs()).sum(1).mean()  over the REAL batch
        delta = jnp.abs(u - pu) + jnp.abs(v - pv)
        if padded:
            delta = delta * valid
        return it + check_every, u, v, jnp.sum(delta)

    _, u, v, _ = lax.while_loop(
        cond, body, (jnp.int32(0), u0, v0, jnp.float32(jnp.inf)))

    # distance = sum_b u[b] @ M @ v[b]  with M = K*C (never materializes pi).
    m_cp.wait()
    M = m_vmem[...]                      # (n, n) f32, symmetric for the default cost
    if padded:
        u = u * valid                    # exact even when max_iter == 0
    s_ = lax.dot_general(v, M, dn, preferred_element_type=jnp.float32)  # (bp, n)
    out_ref[...] = jnp.sum(u * s_).reshape(1, 1)


@functools.partial(
    jax.jit,
    static_argnames=("n", "b_real", "max_iter", "tolerance", "check_every",
                     "use_bf16", "vmem_limit"))
def _run(x2, y2, kern, m, *, n, b_real, max_iter, tolerance, check_every,
         use_bf16, vmem_limit):
    bp = x2.shape[0]
    kfn = functools.partial(
        _sinkhorn_kernel, n=n, b_real=b_real, max_iter=max_iter,
        tolerance=tolerance, check_every=check_every, use_bf16=use_bf16)
    out = pl.pallas_call(
        kfn,
        out_shape=jax.ShapeDtypeStruct((1, 1), jnp.float32),
        grid=(1,),
        in_specs=[
            pl.BlockSpec((bp, n), lambda i: (0, 0)),    # x  (bp, n)
            pl.BlockSpec((bp, n), lambda i: (0, 0)),    # y  (bp, n)
            pl.BlockSpec(memory_space=pl.ANY),          # K  (HBM; DMA'd once, single-buffered)
            pl.BlockSpec(memory_space=pl.ANY),          # M  (HBM; DMA'd once, single-buffered)
        ],
        out_specs=pl.BlockSpec((1, 1), lambda i: (0, 0)),
        scratch_shapes=[
            pltpu.VMEM((n, n), kern.dtype),             # K scratch (single buffer)
            pltpu.VMEM((n, n), jnp.float32),            # M scratch (single buffer)
            pltpu.SemaphoreType.DMA((2,)),
        ],
        compiler_params=pltpu.CompilerParams(
            dimension_semantics=("arbitrary",),
            vmem_limit_bytes=vmem_limit),
    )(x2, y2, kern, m)
    return out[0, 0]


def regularized_wasserstein_distance(x, y, *, d, p=2, epsilon=0.2, max_iter=50,
                                     tolerance=1e-6, check_every=4,
                                     use_bf16_matmul=False):
    n = d * d
    b = x.shape[0]
    bp = max(8, ((b + 7) // 8) * 8)               # pad batch to a sublane multiple
    x2 = x.reshape(b, n).astype(jnp.float32)
    y2 = y.reshape(b, n).astype(jnp.float32)
    if bp != b:
        x2 = jnp.pad(x2, ((0, bp - b), (0, 0)))
        y2 = jnp.pad(y2, ((0, bp - b), (0, 0)))

    kern, m = _tables(int(d), int(p), float(epsilon), bool(use_bf16_matmul))

    # VMEM budget: double-buffered x/y tiles + single-buffered K and M + loop temps.
    k_bytes = n * n * (2 if use_bf16_matmul else 4)
    est = 2 * 2 * bp * n * 4 + k_bytes + n * n * 4 + 12 * bp * n * 4 + (2 << 20)
    cap = _vmem_cap_bytes()
    vmem_limit = int(min(max(est, 4 << 20), int(0.85 * cap)))

    if max_iter > 0:
        check_every = max(1, min(int(check_every), int(max_iter)))
    else:
        check_every = 1

    return _run(x2, y2, kern, m, n=n, b_real=b, max_iter=int(max_iter),
                tolerance=float(tolerance), check_every=check_every,
                use_bf16=bool(use_bf16_matmul), vmem_limit=vmem_limit)


if __name__ == "__main__":
    d = 16          # image side -> n = 256
    b = 2
    key = jax.random.PRNGKey(0)
    kx, ky = jax.random.split(key)
    x = jax.random.uniform(kx, (b, d, d), dtype=jnp.float32)
    y = jax.random.uniform(ky, (b, d, d), dtype=jnp.float32)
    # normalize each image to a probability distribution (typical Sinkhorn input)
    x = x / jnp.sum(x, axis=(1, 2), keepdims=True)
    y = y / jnp.sum(y, axis=(1, 2), keepdims=True)

    dist = regularized_wasserstein_distance(
        x, y, d=d, p=2, epsilon=0.2, max_iter=50, tolerance=1e-6)
    jax.block_until_ready(dist)
    print("KERNEL_OK")
</pallas_src>

<mosaic_0001>
module attributes {stable_mosaic.version = 11 : i64} {
  func.func @_sinkhorn_kernel(%arg0: i32, %arg1: memref<8x256xf32, #tpu.memory_space<vmem>>, %arg2: memref<8x256xf32, #tpu.memory_space<vmem>>, %arg3: memref<256x256xf32, #tpu.memory_space<any>>, %arg4: memref<256x256xf32, #tpu.memory_space<any>>, %arg5: memref<1x1xf32, #tpu.memory_space<vmem>>, %arg6: memref<256x256xf32, #tpu.memory_space<vmem>>, %arg7: memref<256x256xf32, #tpu.memory_space<vmem>>, %arg8: memref<2x!tpu.dma_semaphore, #tpu.memory_space<semaphore_mem>>) attributes {dimension_semantics = [#tpu.dimension_semantics<arbitrary>], iteration_bounds = array<i64: 1>, scalar_prefetch = 0 : i64, scratch_operands = 3 : i64, tpu.core_type = #tpu.core_type<tc>, window_params = [{pipeline_mode = #tpu.pipeline_mode<synchronous>, transform_indices = @transform_0, window_bounds = array<i64: 8, 256>}, {pipeline_mode = #tpu.pipeline_mode<synchronous>, transform_indices = @transform_1, window_bounds = array<i64: 8, 256>}, {}, {}, {pipeline_mode = #tpu.pipeline_mode<synchronous>, transform_indices = @transform_4, window_bounds = array<i64: 1, 1>}]} {
    %c0_i32 = arith.constant 0 : i32
    %0 = tpu.memref_slice %arg8[%c0_i32] : memref<2x!tpu.dma_semaphore, #tpu.memory_space<semaphore_mem>> -> memref<1x!tpu.dma_semaphore, #tpu.memory_space<semaphore_mem>>
    %1 = tpu.memref_squeeze %0 : memref<1x!tpu.dma_semaphore, #tpu.memory_space<semaphore_mem>> -> memref<!tpu.dma_semaphore, #tpu.memory_space<semaphore_mem>>
    tpu.enqueue_dma source(%arg3 : memref<256x256xf32, #tpu.memory_space<any>>) target(%arg6 : memref<256x256xf32, #tpu.memory_space<vmem>>) target_semaphore(%1 : memref<!tpu.dma_semaphore, #tpu.memory_space<semaphore_mem>>)
    %c1_i32 = arith.constant 1 : i32
    %2 = tpu.memref_slice %arg8[%c1_i32] : memref<2x!tpu.dma_semaphore, #tpu.memory_space<semaphore_mem>> -> memref<1x!tpu.dma_semaphore, #tpu.memory_space<semaphore_mem>>
    %3 = tpu.memref_squeeze %2 : memref<1x!tpu.dma_semaphore, #tpu.memory_space<semaphore_mem>> -> memref<!tpu.dma_semaphore, #tpu.memory_space<semaphore_mem>>
    tpu.enqueue_dma source(%arg4 : memref<256x256xf32, #tpu.memory_space<any>>) target(%arg7 : memref<256x256xf32, #tpu.memory_space<vmem>>) target_semaphore(%3 : memref<!tpu.dma_semaphore, #tpu.memory_space<semaphore_mem>>)
    %c0 = arith.constant 0 : index
    %c0_0 = arith.constant 0 : index
    %4 = vector.load %arg1[%c0, %c0_0] : memref<8x256xf32, #tpu.memory_space<vmem>>, vector<8x256xf32>
    %c0_1 = arith.constant 0 : index
    %c0_2 = arith.constant 0 : index
    %5 = vector.load %arg2[%c0_1, %c0_2] : memref<8x256xf32, #tpu.memory_space<vmem>>, vector<8x256xf32>
    %6 = tpu.iota {dimensions = array<i32: 0>} : vector<8x1xi32>
    %c2_i32 = arith.constant 2 : i32
    %7 = vector.broadcast %c2_i32 : i32 to vector<8x1xi32>
    %8 = arith.cmpi slt, %6, %7 : vector<8x1xi32>
    %9 = arith.extui %8 : vector<8x1xi1> to vector<8x1xi32>
    %10 = arith.sitofp %9 : vector<8x1xi32> to vector<8x1xf32>
    %cst = arith.constant 3.906250e-03 : f32
    %11 = vector.broadcast %cst : f32 to vector<8x256xf32>
    %cst_3 = arith.constant 3.906250e-03 : f32
    %12 = vector.broadcast %cst_3 : f32 to vector<8x256xf32>
    %c0_i32_4 = arith.constant 0 : i32
    %13 = tpu.memref_slice %arg8[%c0_i32_4] : memref<2x!tpu.dma_semaphore, #tpu.memory_space<semaphore_mem>> -> memref<1x!tpu.dma_semaphore, #tpu.memory_space<semaphore_mem>>
    %14 = tpu.memref_squeeze %13 : memref<1x!tpu.dma_semaphore, #tpu.memory_space<semaphore_mem>> -> memref<!tpu.dma_semaphore, #tpu.memory_space<semaphore_mem>>
    tpu.wait_dma2 semaphore(%14 : memref<!tpu.dma_semaphore, #tpu.memory_space<semaphore_mem>>) src(%arg3 : memref<256x256xf32, #tpu.memory_space<any>>) dst(%arg6 : memref<256x256xf32, #tpu.memory_space<vmem>>)
    %c0_5 = arith.constant 0 : index
    %c0_6 = arith.constant 0 : index
    %15 = vector.load %arg6[%c0_5, %c0_6] : memref<256x256xf32, #tpu.memory_space<vmem>>, vector<256x256xf32>
    %cst_7 = arith.constant 2.000000e-06 : f32
    %c0_i32_8 = arith.constant 0 : i32
    %cst_9 = arith.constant 0x7F800000 : f32
    %16:4 = scf.while (%arg9 = %c0_i32_8, %arg10 = %11, %arg11 = %12, %arg12 = %cst_9) : (i32, vector<8x256xf32>, vector<8x256xf32>, f32) -> (i32, vector<8x256xf32>, vector<8x256xf32>, f32) {
      %c50_i32 = arith.constant 50 : i32
      %30 = arith.cmpi slt, %arg9, %c50_i32 : i32
      %31 = arith.cmpf oge, %arg12, %cst_7 : f32
      %32 = arith.andi %30, %31 : i1
      scf.condition(%32) %arg9, %arg10, %arg11, %arg12 : i32, vector<8x256xf32>, vector<8x256xf32>, f32
    } do {
    ^bb0(%arg9: i32, %arg10: vector<8x256xf32>, %arg11: vector<8x256xf32>, %arg12: f32):
      %cst_17 = arith.constant dense<0.000000e+00> : vector<8x256xf32>
      %30 = tpu.matmul %arg11, %15, %cst_17 {dimension_numbers = #tpu.dot_dimension_numbers<[1], [0], [0], [1], [0, 0, 1, 1], [], []>} : vector<8x256xf32>, vector<256x256xf32>, vector<8x256xf32> -> vector<8x256xf32>
      %cst_18 = arith.constant 9.99999993E-9 : f32
      %31 = vector.broadcast %cst_18 : f32 to vector<8x256xf32>
      %32 = arith.addf %30, %31 : vector<8x256xf32>
      %33 = arith.divf %4, %32 : vector<8x256xf32>
      %cst_19 = arith.constant dense<0.000000e+00> : vector<8x256xf32>
      %34 = tpu.matmul %33, %15, %cst_19 {dimension_numbers = #tpu.dot_dimension_numbers<[1], [0], [0], [1], [0, 0, 1, 1], [], []>} : vector<8x256xf32>, vector<256x256xf32>, vector<8x256xf32> -> vector<8x256xf32>
      %cst_20 = arith.constant 9.99999993E-9 : f32
      %35 = vector.broadcast %cst_20 : f32 to vector<8x256xf32>
      %36 = arith.addf %34, %35 : vector<8x256xf32>
      %37 = arith.divf %5, %36 : vector<8x256xf32>
      %c0_i32_21 = arith.constant 0 : i32
      %38 = arith.addi %arg9, %c0_i32_21 : i32
      %c50_i32 = arith.constant 50 : i32
      %39 = arith.cmpi slt, %38, %c50_i32 : i32
      %40 = arith.select %39, %33, %arg10 : vector<8x256xf32>
      %41 = arith.select %39, %37, %arg11 : vector<8x256xf32>
      %cst_22 = arith.constant dense<0.000000e+00> : vector<8x256xf32>
      %42 = tpu.matmul %41, %15, %cst_22 {dimension_numbers = #tpu.dot_dimension_numbers<[1], [0], [0], [1], [0, 0, 1, 1], [], []>} : vector<8x256xf32>, vector<256x256xf32>, vector<8x256xf32> -> vector<8x256xf32>
      %cst_23 = arith.constant 9.99999993E-9 : f32
      %43 = vector.broadcast %cst_23 : f32 to vector<8x256xf32>
      %44 = arith.addf %42, %43 : vector<8x256xf32>
      %45 = arith.divf %4, %44 : vector<8x256xf32>
      %cst_24 = arith.constant dense<0.000000e+00> : vector<8x256xf32>
      %46 = tpu.matmul %45, %15, %cst_24 {dimension_numbers = #tpu.dot_dimension_numbers<[1], [0], [0], [1], [0, 0, 1, 1], [], []>} : vector<8x256xf32>, vector<256x256xf32>, vector<8x256xf32> -> vector<8x256xf32>
      %cst_25 = arith.constant 9.99999993E-9 : f32
      %47 = vector.broadcast %cst_25 : f32 to vector<8x256xf32>
      %48 = arith.addf %46, %47 : vector<8x256xf32>
      %49 = arith.divf %5, %48 : vector<8x256xf32>
      %c1_i32_26 = arith.constant 1 : i32
      %50 = arith.addi %arg9, %c1_i32_26 : i32
      %c50_i32_27 = arith.constant 50 : i32
      %51 = arith.cmpi slt, %50, %c50_i32_27 : i32
      %52 = arith.select %51, %45, %40 : vector<8x256xf32>
      %53 = arith.select %51, %49, %41 : vector<8x256xf32>
      %cst_28 = arith.constant dense<0.000000e+00> : vector<8x256xf32>
      %54 = tpu.matmul %53, %15, %cst_28 {dimension_numbers = #tpu.dot_dimension_numbers<[1], [0], [0], [1], [0, 0, 1, 1], [], []>} : vector<8x256xf32>, vector<256x256xf32>, vector<8x256xf32> -> vector<8x256xf32>
      %cst_29 = arith.constant 9.99999993E-9 : f32
      %55 = vector.broadcast %cst_29 : f32 to vector<8x256xf32>
      %56 = arith.addf %54, %55 : vector<8x256xf32>
      %57 = arith.divf %4, %56 : vector<8x256xf32>
      %cst_30 = arith.constant dense<0.000000e+00> : vector<8x256xf32>
      %58 = tpu.matmul %57, %15, %cst_30 {dimension_numbers = #tpu.dot_dimension_numbers<[1], [0], [0], [1], [0, 0, 1, 1], [], []>} : vector<8x256xf32>, vector<256x256xf32>, vector<8x256xf32> -> vector<8x256xf32>
      %cst_31 = arith.constant 9.99999993E-9 : f32
      %59 = vector.broadcast %cst_31 : f32 to vector<8x256xf32>
      %60 = arith.addf %58, %59 : vector<8x256xf32>
      %61 = arith.divf %5, %60 : vector<8x256xf32>
      %c2_i32_32 = arith.constant 2 : i32
      %62 = arith.addi %arg9, %c2_i32_32 : i32
      %c50_i32_33 = arith.constant 50 : i32
      %63 = arith.cmpi slt, %62, %c50_i32_33 : i32
      %64 = arith.select %63, %57, %52 : vector<8x256xf32>
      %65 = arith.select %63, %61, %53 : vector<8x256xf32>
      %cst_34 = arith.constant dense<0.000000e+00> : vector<8x256xf32>
      %66 = tpu.matmul %65, %15, %cst_34 {dimension_numbers = #tpu.dot_dimension_numbers<[1], [0], [0], [1], [0, 0, 1, 1], [], []>} : vector<8x256xf32>, vector<256x256xf32>, vector<8x256xf32> -> vector<8x256xf32>
      %cst_35 = arith.constant 9.99999993E-9 : f32
      %67 = vector.broadcast %cst_35 : f32 to vector<8x256xf32>
      %68 = arith.addf %66, %67 : vector<8x256xf32>
      %69 = arith.divf %4, %68 : vector<8x256xf32>
      %cst_36 = arith.constant dense<0.000000e+00> : vector<8x256xf32>
      %70 = tpu.matmul %69, %15, %cst_36 {dimension_numbers = #tpu.dot_dimension_numbers<[1], [0], [0], [1], [0, 0, 1, 1], [], []>} : vector<8x256xf32>, vector<256x256xf32>, vector<8x256xf32> -> vector<8x256xf32>
      %cst_37 = arith.constant 9.99999993E-9 : f32
      %71 = vector.broadcast %cst_37 : f32 to vector<8x256xf32>
      %72 = arith.addf %70, %71 : vector<8x256xf32>
      %73 = arith.divf %5, %72 : vector<8x256xf32>
      %c3_i32 = arith.constant 3 : i32
      %74 = arith.addi %arg9, %c3_i32 : i32
      %c50_i32_38 = arith.constant 50 : i32
      %75 = arith.cmpi slt, %74, %c50_i32_38 : i32
      %76 = arith.select %75, %69, %64 : vector<8x256xf32>
      %77 = arith.select %75, %73, %65 : vector<8x256xf32>
      %78 = arith.subf %76, %64 : vector<8x256xf32>
      %79 = math.absf %78 : vector<8x256xf32>
      %80 = arith.subf %77, %65 : vector<8x256xf32>
      %81 = math.absf %80 : vector<8x256xf32>
      %82 = arith.addf %79, %81 : vector<8x256xf32>
      %83 = vector.broadcast %10 : vector<8x1xf32> to vector<8x256xf32>
      %84 = arith.mulf %82, %83 : vector<8x256xf32>
      %c4_i32 = arith.constant 4 : i32
      %85 = arith.addi %arg9, %c4_i32 : i32
      %86 = vector.shape_cast %84 : vector<8x256xf32> to vector<1x8x256xf32>
      %cst_39 = arith.constant dense<0.000000e+00> : vector<1xf32>
      %87 = vector.multi_reduction <add>, %86, %cst_39 [1, 2] : vector<1x8x256xf32> to vector<1xf32>
      %88 = vector.shape_cast %87 : vector<1xf32> to vector<1x1x1xf32>
      %89 = vector.extract %88[0, 0, 0] : f32 from vector<1x1x1xf32>
      scf.yield %85, %76, %77, %89 : i32, vector<8x256xf32>, vector<8x256xf32>, f32
    }
    %c1_i32_10 = arith.constant 1 : i32
    %17 = tpu.memref_slice %arg8[%c1_i32_10] : memref<2x!tpu.dma_semaphore, #tpu.memory_space<semaphore_mem>> -> memref<1x!tpu.dma_semaphore, #tpu.memory_space<semaphore_mem>>
    %18 = tpu.memref_squeeze %17 : memref<1x!tpu.dma_semaphore, #tpu.memory_space<semaphore_mem>> -> memref<!tpu.dma_semaphore, #tpu.memory_space<semaphore_mem>>
    tpu.wait_dma2 semaphore(%18 : memref<!tpu.dma_semaphore, #tpu.memory_space<semaphore_mem>>) src(%arg4 : memref<256x256xf32, #tpu.memory_space<any>>) dst(%arg7 : memref<256x256xf32, #tpu.memory_space<vmem>>)
    %c0_11 = arith.constant 0 : index
    %c0_12 = arith.constant 0 : index
    %19 = vector.load %arg7[%c0_11, %c0_12] : memref<256x256xf32, #tpu.memory_space<vmem>>, vector<256x256xf32>
    %20 = vector.broadcast %10 : vector<8x1xf32> to vector<8x256xf32>
    %21 = arith.mulf %16#1, %20 : vector<8x256xf32>
    %cst_13 = arith.constant dense<0.000000e+00> : vector<8x256xf32>
    %22 = tpu.matmul %16#2, %19, %cst_13 {dimension_numbers = #tpu.dot_dimension_numbers<[1], [0], [0], [1], [0, 0, 1, 1], [], []>} : vector<8x256xf32>, vector<256x256xf32>, vector<8x256xf32> -> vector<8x256xf32>
    %23 = arith.mulf %21, %22 : vector<8x256xf32>
    %24 = vector.shape_cast %23 : vector<8x256xf32> to vector<1x8x256xf32>
    %cst_14 = arith.constant dense<0.000000e+00> : vector<1xf32>
    %25 = vector.multi_reduction <add>, %24, %cst_14 [1, 2] : vector<1x8x256xf32> to vector<1xf32>
    %26 = vector.shape_cast %25 : vector<1xf32> to vector<1x1x1xf32>
    %27 = vector.extract %26[0, 0, 0] : f32 from vector<1x1x1xf32>
    %28 = vector.broadcast %27 : f32 to vector<1x1xf32>
    %c0_15 = arith.constant 0 : index
    %c0_16 = arith.constant 0 : index
    %29 = vector.load %arg5[%c0_15, %c0_16] : memref<1x1xf32, #tpu.memory_space<vmem>>, vector<1x1xf32>
    tpu.vector_store %arg5[%c0_15, %c0_16], %28 {strides = array<i32>} : memref<1x1xf32, #tpu.memory_space<vmem>>, vector<1x1xf32>,
    return
  }
  func.func @transform_0(%arg0: i32) -> (i32, i32) {
    %c0_i32 = arith.constant 0 : i32
    %c0_i32_0 = arith.constant 0 : i32
    %c0_i32_1 = arith.constant 0 : i32
    return %c0_i32, %c0_i32_0 : i32, i32
  }
  func.func @transform_1(%arg0: i32) -> (i32, i32) {
    %c0_i32 = arith.constant 0 : i32
    %c0_i32_0 = arith.constant 0 : i32
    %c0_i32_1 = arith.constant 0 : i32
    return %c0_i32, %c0_i32_0 : i32, i32
  }
  func.func @transform_4(%arg0: i32) -> (i32, i32) {
    %c0_i32 = arith.constant 0 : i32
    %c0_i32_0 = arith.constant 0 : i32
    %c0_i32_1 = arith.constant 0 : i32
    return %c0_i32, %c0_i32_0 : i32, i32
  }
}

</mosaic_0001>

<llo_original>
// kernel: _run.1
$region0: #{_run.1}
  #allocation0 [shape = 'u32[]', space=smem, size = 0x4, offset = 0x4, fixed_abs, tag = 'smem constant byte address 0x4 - core index']
  #allocation1 [shape = 'u32[144,128]{1,0:T(1,128)}', space=vmem, size = 0x12000, scoped, tag = 'internal scratch']
  #allocation2 [shape = 'f32[256,256]{1,0:T(8,128)}', space=vmem, size = 0x40000, scoped, tag = 'scratch operand']
  #allocation3 [shape = 'f32[256,256]{1,0:T(8,128)}', space=vmem, size = 0x40000, scoped, tag = 'scratch operand']
  #allocation4 [shape = 's32[2]{0}', space=sflag, size = 0x8, scoped, tag = 'scratch operand']
  #allocation11 [shape = 's32[]', space=sflag, size = 0x4, offset = 0, fixed_abs, tag = 'sflag constant byte address 0x0 - dummy sync flag']
  #allocation12 [shape = 's32[]', space=sflag, size = 0x4, offset = 0, fixed_abs, tag = 'sflag constant byte address 0x0 - dummy sync flag']
  #allocation13 [shape = 'u32[]', space=smem, size = 0x4, offset = 0x44, fixed_abs, tag = 'smem constant byte address 0x44 - assertion arg 0']
  #allocation14 [shape = 'u32[]', space=smem, size = 0x4, offset = 0x48, fixed_abs, tag = 'smem constant byte address 0x48 - assertion arg 1']
  #allocation15 [shape = 's32[]', space=sflag, size = 0x4, offset = 0, fixed_abs, tag = 'sflag constant byte address 0x0 - dummy sync flag']
  #allocation16 [shape = 's32[]', space=sflag, size = 0x4, offset = 0, fixed_abs, tag = 'sflag constant byte address 0x0 - dummy sync flag']
  %s0 = inlined_call_operand.hbm [shape: f32[8,256], index: 0, kind: input, shape index: {}]
  %s1 = inlined_call_operand.hbm [shape: f32[8,256], index: 1, kind: input, shape index: {}]
  %s2 = inlined_call_operand.hbm [shape: f32[256,256], index: 2, kind: input, shape index: {}]
  %s3 = inlined_call_operand.hbm [shape: f32[256,256], index: 3, kind: input, shape index: {}]
  %s4 = inlined_call_operand.hbm [shape: f32[1,1], index: 4, kind: output, shape index: {}]
  %s5 = sld [smem:[#allocation0]]
  $region41: #{_run.1} parent=0
    _
  %s7 = ssub.s32 1, %s5
  %s8 = scalar_select 0, %s7, %s5
  $region1: #{_run.1} parent=0
    #allocation5 [shape = 'u8[8192]{0}', space=vmem, size = 0x2000, scoped, tag = 'input window, operand 0, single buffered']
    #allocation6 [shape = 's32[1]{0}', space=sflag, size = 0x4, scoped, tag = 'scoped memory for _run.1']
    #allocation7 [shape = 's32[1]{0}', space=sflag, size = 0x4, scoped, tag = 'scoped memory for _run.1']
    #allocation8 [shape = 'u8[8192]{0}', space=vmem, size = 0x2000, scoped, tag = 'input window, operand 1, single buffered']
    #allocation9 [shape = 's32[1]{0}', space=sflag, size = 0x4, scoped, tag = 'scoped memory for _run.1']
    #allocation10 [shape = 'u8[512]{0}', space=vmem, size = 0x400, scoped, tag = 'output window, operand 0, single buffered']
    %9 = vsyncpa [#allocation6], 0
    %10 = vsyncpa [#allocation9], 0
    %11 = vsyncpa [#allocation7], 0
    // Predicated region
    $region2: #{_run.1} parent=1 // pred_check
      _
    $region3: #{_run.1} parent=1 // pred_check_branch
      %13 = sbr.rel (0) target = $region5
    $region4: #{_run.1} parent=1 // pred_region
      %s15 = ssub.s32 256, 256
      %16 = vsyncadd [#allocation6], %s15
      %s18 = sshll.u32 [#allocation5], 4
      %s19 = int_to_ptr.vmem [resolvable:$true] %s18
      %21 = dma.hbm_to_vmem [thread:$0]  %s0, 256, %s19, [#allocation6]
    $region5: #{_run.1} parent=1 // pred_fallthru
      _
    // Predicated region
    $region6: #{_run.1} parent=1 // pred_check
      _
    $region7: #{_run.1} parent=1 // pred_check_branch
      %23 = sbr.rel (0) target = $region9
    $region8: #{_run.1} parent=1 // pred_region
      %s25 = ssub.s32 256, 256
      %26 = vsyncadd [#allocation9], %s25
      %s28 = sshll.u32 [#allocation8], 4
      %s29 = int_to_ptr.vmem [resolvable:$true] %s28
      %31 = dma.hbm_to_vmem [thread:$0]  %s1, 256, %s29, [#allocation9]
    $region9: #{_run.1} parent=1 // pred_fallthru
      _
    // Predicated region
    $region10: #{_run.1} parent=1 // pred_check
      _
    $region11: #{_run.1} parent=1 // pred_check_branch
      %33 = sbr.rel (0) target = $region13
    $region12: #{_run.1} parent=1 // pred_region
      %34 = dma.done [#allocation6], 256
    $region13: #{_run.1} parent=1 // pred_fallthru
      _
    // Predicated region
    $region14: #{_run.1} parent=1 // pred_check
      _
    $region15: #{_run.1} parent=1 // pred_check_branch
      %36 = sbr.rel (0) target = $region17
    $region16: #{_run.1} parent=1 // pred_region
      %37 = dma.done [#allocation9], 256
    $region17: #{_run.1} parent=1 // pred_fallthru
      _
    // Predicated region
    $region18: #{_run.1} parent=1 // pred_check
      _
    $region19: #{_run.1} parent=1 // pred_check_branch
      %39 = sbr.rel target = $region21
    $region20: #{_run.1} parent=1 // pred_region
      %40 = sst [smem:[#allocation13]] [#allocation12]
      %41 = sst [smem:[#allocation14]] [#allocation11]
    $region21: #{_run.1} parent=1 // pred_fallthru
      _
    %43 = shalt.err (0)
    %s45 = sshll.u32 [#allocation2], 4
    %s46 = int_to_ptr.vmem [resolvable:$true] %s45
    %48 = dma.hbm_to_vmem [thread:$0]  %s2, 8192, %s46, [#allocation4]
    %s49 = scalar_lea.sflag [#allocation4], 1
    // Predicated region
    $region22: #{_run.1} parent=1 // pred_check
      _
    $region23: #{_run.1} parent=1 // pred_check_branch
      %51 = sbr.rel target = $region25
    $region24: #{_run.1} parent=1 // pred_region
      %52 = sst [smem:[#allocation13]] [#allocation16]
      %53 = sst [smem:[#allocation14]] [#allocation15]
    $region25: #{_run.1} parent=1 // pred_fallthru
      _
    %55 = shalt.err (0)
    %s57 = sshll.u32 [#allocation3], 4
    %s58 = int_to_ptr.vmem [resolvable:$true] %s57
    %60 = dma.hbm_to_vmem [thread:$0]  %s3, 8192, %s58, %s49
    %v61 = vld [vmem:[#allocation5] sm:$0xff]
    %v62 = vld [vmem:[#allocation5 + $0x8] sm:$0xff]
    %v63 = vld [vmem:[#allocation8] sm:$0xff]
    %v64 = vld [vmem:[#allocation8 + $0x8] sm:$0xff]
    %v65 = vlaneseq
    %v66 = vshrl.u32 %v65, 7
    %vm67 = vcmp.lt.s32.totalorder %v66, 2
    %v68 = vsel %vm67, 1, 0
    %v69 = vcvt.s32.f32 %v68
    %s70 = smul.u32 8, 32
    %s71 = smul.u32 %s70, 2
    %s72 = sshll.u32 %s71, 4
    %73 = dma.done [#allocation4], %s72
    %v74 = vld [vmem:[#allocation2] sm:$0xff]
    %v75 = vld [vmem:[#allocation2 + $0x8] sm:$0xff]
    %v76 = vld [vmem:[#allocation2 + $0x10] sm:$0xff]
    %v77 = vld [vmem:[#allocation2 + $0x18] sm:$0xff]
    %v78 = vld [vmem:[#allocation2 + $0x20] sm:$0xff]
    %v79 = vld [vmem:[#allocation2 + $0x28] sm:$0xff]
    %v80 = vld [vmem:[#allocation2 + $0x30] sm:$0xff]
    %v81 = vld [vmem:[#allocation2 + $0x38] sm:$0xff]
    %v82 = vld [vmem:[#allocation2 + $0x40] sm:$0xff]
    %v83 = vld [vmem:[#allocation2 + $0x48] sm:$0xff]
    %v84 = vld [vmem:[#allocation2 + $0x50] sm:$0xff]
    %v85 = vld [vmem:[#allocation2 + $0x58] sm:$0xff]
    %v86 = vld [vmem:[#allocation2 + $0x60] sm:$0xff]
    %v87 = vld [vmem:[#allocation2 + $0x68] sm:$0xff]
    %v88 = vld [vmem:[#allocation2 + $0x70] sm:$0xff]
    %v89 = vld [vmem:[#allocation2 + $0x78] sm:$0xff]
    %v90 = vld [vmem:[#allocation2 + $0x80] sm:$0xff]
    %v91 = vld [vmem:[#allocation2 + $0x88] sm:$0xff]
    %v92 = vld [vmem:[#allocation2 + $0x90] sm:$0xff]
    %v93 = vld [vmem:[#allocation2 + $0x98] sm:$0xff]
    %v94 = vld [vmem:[#allocation2 + $0xa0] sm:$0xff]
    %v95 = vld [vmem:[#allocation2 + $0xa8] sm:$0xff]
    %v96 = vld [vmem:[#allocation2 + $0xb0] sm:$0xff]
    %v97 = vld [vmem:[#allocation2 + $0xb8] sm:$0xff]
    %v98 = vld [vmem:[#allocation2 + $0xc0] sm:$0xff]
    %v99 = vld [vmem:[#allocation2 + $0xc8] sm:$0xff]
    %v100 = vld [vmem:[#allocation2 + $0xd0] sm:$0xff]
    %v101 = vld [vmem:[#allocation2 + $0xd8] sm:$0xff]
    %v102 = vld [vmem:[#allocation2 + $0xe0] sm:$0xff]
    %v103 = vld [vmem:[#allocation2 + $0xe8] sm:$0xff]
    %v104 = vld [vmem:[#allocation2 + $0xf0] sm:$0xff]
    %v105 = vld [vmem:[#allocation2 + $0xf8] sm:$0xff]
    %v106 = vld [vmem:[#allocation2 + $0x100] sm:$0xff]
    %v107 = vld [vmem:[#allocation2 + $0x108] sm:$0xff]
    %v108 = vld [vmem:[#allocation2 + $0x110] sm:$0xff]
    %v109 = vld [vmem:[#allocation2 + $0x118] sm:$0xff]
    %v110 = vld [vmem:[#allocation2 + $0x120] sm:$0xff]
    %v111 = vld [vmem:[#allocation2 + $0x128] sm:$0xff]
    %v112 = vld [vmem:[#allocation2 + $0x130] sm:$0xff]
    %v113 = vld [vmem:[#allocation2 + $0x138] sm:$0xff]
    %v114 = vld [vmem:[#allocation2 + $0x140] sm:$0xff]
    %v115 = vld [vmem:[#allocation2 + $0x148] sm:$0xff]
    %v116 = vld [vmem:[#allocation2 + $0x150] sm:$0xff]
    %v117 = vld [vmem:[#allocation2 + $0x158] sm:$0xff]
    %v118 = vld [vmem:[#allocation2 + $0x160] sm:$0xff]
    %v119 = vld [vmem:[#allocation2 + $0x168] sm:$0xff]
    %v120 = vld [vmem:[#allocation2 + $0x170] sm:$0xff]
    %v121 = vld [vmem:[#allocation2 + $0x178] sm:$0xff]
    %v122 = vld [vmem:[#allocation2 + $0x180] sm:$0xff]
    %v123 = vld [vmem:[#allocation2 + $0x188] sm:$0xff]
    %v124 = vld [vmem:[#allocation2 + $0x190] sm:$0xff]
    %v125 = vld [vmem:[#allocation2 + $0x198] sm:$0xff]
    %v126 = vld [vmem:[#allocation2 + $0x1a0] sm:$0xff]
    %v127 = vld [vmem:[#allocation2 + $0x1a8] sm:$0xff]
    %v128 = vld [vmem:[#allocation2 + $0x1b0] sm:$0xff]
    %v129 = vld [vmem:[#allocation2 + $0x1b8] sm:$0xff]
    %v130 = vld [vmem:[#allocation2 + $0x1c0] sm:$0xff]
    %v131 = vld [vmem:[#allocation2 + $0x1c8] sm:$0xff]
    %v132 = vld [vmem:[#allocation2 + $0x1d0] sm:$0xff]
    %v133 = vld [vmem:[#allocation2 + $0x1d8] sm:$0xff]
    %v134 = vld [vmem:[#allocation2 + $0x1e0] sm:$0xff]
    %v135 = vld [vmem:[#allocation2 + $0x1e8] sm:$0xff]
    %v136 = vld [vmem:[#allocation2 + $0x1f0] sm:$0xff]
    %v137 = vld [vmem:[#allocation2 + $0x1f8] sm:$0xff]
    // While loop
    $region26: #{_run.1} parent=1 // loop_pre_header
      _
    $region27: #{_run.1} parent=1 // loop_header
      %s139 = sphi 0, %s798
      %v140 = vphi 0.00390625, %v782
      %v141 = vphi 0.00390625, %v783
      %v142 = vphi 0.00390625, %v784
      %v143 = vphi 0.00390625, %v785
      %s144 = sphi inf, %s808
      %p145 = scmp.lt.s32.totalorder %s139, 50
      %p146 = scmp.ge.f32.partialorder %s144, 2e-06
      %p147 = pnand %p145, %p146
      %p148 = pneg %p147
    $region28: #{_run.1} parent=1 // loop_header_branch
      %150 = sbr.rel (%p147) target = $region32
    $region29: #{_run.1} parent=1 // loop_body
      %151 = vmatprep.subr.mxu0 %v75
      %152 = vmatpush1.msra.mxu0 %v74
      %153 = vmatprep.subr.mxu0 %v77
      %154 = vmatpush1.msra.mxu0 %v76
      %155 = vmatprep.subr.mxu0 %v79
      %156 = vmatpush1.msra.mxu0 %v78
      %157 = vmatprep.subr.mxu0 %v81
      %158 = vmatpush1.msra.mxu0 %v80
      %159 = vmatprep.subr.mxu0 %v83
      %160 = vmatpush1.msra.mxu0 %v82
      %161 = vmatprep.subr.mxu0 %v85
      %162 = vmatpush1.msra.mxu0 %v84
      %163 = vmatprep.subr.mxu0 %v87
      %164 = vmatpush1.msra.mxu0 %v86
      %165 = vmatprep.subr.mxu0 %v89
      %166 = vmatpush1.msra.mxu0 %v88
      %167 = vmatprep.subr.mxu0 %v91
      %168 = vmatpush1.msra.mxu0 %v90
      %169 = vmatprep.subr.mxu0 %v93
      %170 = vmatpush1.msra.mxu0 %v92
      %171 = vmatprep.subr.mxu0 %v95
      %172 = vmatpush1.msra.mxu0 %v94
      %173 = vmatprep.subr.mxu0 %v97
      %174 = vmatpush1.msra.mxu0 %v96
      %175 = vmatprep.subr.mxu0 %v99
      %176 = vmatpush1.msra.mxu0 %v98
      %177 = vmatprep.subr.mxu0 %v101
      %178 = vmatpush1.msra.mxu0 %v100
      %179 = vmatprep.subr.mxu0 %v103
      %180 = vmatpush1.msra.mxu0 %v102
      %181 = vmatprep.subr.mxu0 %v105
      %182 = vmatpush1.msra.mxu0 %v104
      %183 = vmatprep.subr.mxu0 %v107
      %184 = vmatpush1.msra.mxu0 %v106
      %185 = vmatprep.subr.mxu0 %v109
      %186 = vmatpush1.msra.mxu0 %v108
      %187 = vmatprep.subr.mxu0 %v111
      %188 = vmatpush1.msra.mxu0 %v110
      %189 = vmatprep.subr.mxu0 %v113
      %190 = vmatpush1.msra.mxu0 %v112
      %191 = vmatprep.subr.mxu0 %v115
      %192 = vmatpush1.msra.mxu0 %v114
      %193 = vmatprep.subr.mxu0 %v117
      %194 = vmatpush1.msra.mxu0 %v116
      %195 = vmatprep.subr.mxu0 %v119
      %196 = vmatpush1.msra.mxu0 %v118
      %197 = vmatprep.subr.mxu0 %v121
      %198 = vmatpush1.msra.mxu0 %v120
      %199 = vmatprep.subr.mxu0 %v123
      %200 = vmatpush1.msra.mxu0 %v122
      %201 = vmatprep.subr.mxu0 %v125
      %202 = vmatpush1.msra.mxu0 %v124
      %203 = vmatprep.subr.mxu0 %v127
      %204 = vmatpush1.msra.mxu0 %v126
      %205 = vmatprep.subr.mxu0 %v129
      %206 = vmatpush1.msra.mxu0 %v128
      %207 = vmatprep.subr.mxu0 %v131
      %208 = vmatpush1.msra.mxu0 %v130
      %209 = vmatprep.subr.mxu0 %v133
      %210 = vmatpush1.msra.mxu0 %v132
      %211 = vmatprep.subr.mxu0 %v135
      %212 = vmatpush1.msra.mxu0 %v134
      %213 = vmatprep.subr.mxu0 %v137
      %214 = vmatpush1.msra.mxu0 %v136
      %215 = vmatprep.mubr.f32.mxu0 %v143
      %216 = vmatmul.mubr.f32.gmra.mrb[0].mxu0 %v142
      %v217 = vpop.f32.mrb[0].mxu0
      %v218 = vadd.f32 1e-08, %v217
      %v219 = vpop.f32.mrb[0].mxu0
      %v220 = vadd.f32 1e-08, %v219
      %221 = vdwg.mxu0
      %v222 = vrcp.pop %v218
      %v223 = vmul.f32 %v61, %v222
      %v224 = vrcp.pop %v220
      %v225 = vmul.f32 %v62, %v224
      %226 = vmatprep.subr.mxu0 %v75
      %227 = vmatpush1.msra.mxu0 %v74
      %228 = vmatprep.subr.mxu0 %v77
      %229 = vmatpush1.msra.mxu0 %v76
      %230 = vmatprep.subr.mxu0 %v79
      %231 = vmatpush1.msra.mxu0 %v78
      %232 = vmatprep.subr.mxu0 %v81
      %233 = vmatpush1.msra.mxu0 %v80
      %234 = vmatprep.subr.mxu0 %v83
      %235 = vmatpush1.msra.mxu0 %v82
      %236 = vmatprep.subr.mxu0 %v85
      %237 = vmatpush1.msra.mxu0 %v84
      %238 = vmatprep.subr.mxu0 %v87
      %239 = vmatpush1.msra.mxu0 %v86
      %240 = vmatprep.subr.mxu0 %v89
      %241 = vmatpush1.msra.mxu0 %v88
      %242 = vmatprep.subr.mxu0 %v91
      %243 = vmatpush1.msra.mxu0 %v90
      %244 = vmatprep.subr.mxu0 %v93
      %245 = vmatpush1.msra.mxu0 %v92
      %246 = vmatprep.subr.mxu0 %v95
      %247 = vmatpush1.msra.mxu0 %v94
      %248 = vmatprep.subr.mxu0 %v97
      %249 = vmatpush1.msra.mxu0 %v96
      %250 = vmatprep.subr.mxu0 %v99
      %251 = vmatpush1.msra.mxu0 %v98
      %252 = vmatprep.subr.mxu0 %v101
      %253 = vmatpush1.msra.mxu0 %v100
      %254 = vmatprep.subr.mxu0 %v103
      %255 = vmatpush1.msra.mxu0 %v102
      %256 = vmatprep.subr.mxu0 %v105
      %257 = vmatpush1.msra.mxu0 %v104
      %258 = vmatprep.subr.mxu0 %v107
      %259 = vmatpush1.msra.mxu0 %v106
      %260 = vmatprep.subr.mxu0 %v109
      %261 = vmatpush1.msra.mxu0 %v108
      %262 = vmatprep.subr.mxu0 %v111
      %263 = vmatpush1.msra.mxu0 %v110
      %264 = vmatprep.subr.mxu0 %v113
      %265 = vmatpush1.msra.mxu0 %v112
      %266 = vmatprep.subr.mxu0 %v115
      %267 = vmatpush1.msra.mxu0 %v114
      %268 = vmatprep.subr.mxu0 %v117
      %269 = vmatpush1.msra.mxu0 %v116
      %270 = vmatprep.subr.mxu0 %v119
      %271 = vmatpush1.msra.mxu0 %v118
      %272 = vmatprep.subr.mxu0 %v121
      %273 = vmatpush1.msra.mxu0 %v120
      %274 = vmatprep.subr.mxu0 %v123
      %275 = vmatpush1.msra.mxu0 %v122
      %276 = vmatprep.subr.mxu0 %v125
      %277 = vmatpush1.msra.mxu0 %v124
      %278 = vmatprep.subr.mxu0 %v127
      %279 = vmatpush1.msra.mxu0 %v126
      %280 = vmatprep.subr.mxu0 %v129
      %281 = vmatpush1.msra.mxu0 %v128
      %282 = vmatprep.subr.mxu0 %v131
      %283 = vmatpush1.msra.mxu0 %v130
      %284 = vmatprep.subr.mxu0 %v133
      %285 = vmatpush1.msra.mxu0 %v132
      %286 = vmatprep.subr.mxu0 %v135
      %287 = vmatpush1.msra.mxu0 %v134
      %288 = vmatprep.subr.mxu0 %v137
      %289 = vmatpush1.msra.mxu0 %v136
      %290 = vmatprep.mubr.f32.mxu0 %v225
      %291 = vmatmul.mubr.f32.gmra.mrb[0].mxu0 %v223
      %v292 = vpop.f32.mrb[0].mxu0
      %v293 = vadd.f32 1e-08, %v292
      %v294 = vpop.f32.mrb[0].mxu0
      %v295 = vadd.f32 1e-08, %v294
      %296 = vdwg.mxu0
      %v297 = vrcp.pop %v293
      %v298 = vmul.f32 %v63, %v297
      %v299 = vrcp.pop %v295
      %v300 = vmul.f32 %v64, %v299
      %p301 = scmp.lt.s32.totalorder %s139, 50
      %s302 = scalar_select %p301, 1, 0
      %v303 = vstv %s302
      %vm304 = vcmp.eq.s32.totalorder %v303, 1
      %v305 = vsel %vm304, %v223, %v140
      %v306 = vsel %vm304, %v225, %v141
      %v307 = vsel %vm304, %v298, %v142
      %v308 = vsel %vm304, %v300, %v143
      %309 = vmatprep.subr.mxu0 %v75
      %310 = vmatpush1.msra.mxu0 %v74
      %311 = vmatprep.subr.mxu0 %v77
      %312 = vmatpush1.msra.mxu0 %v76
      %313 = vmatprep.subr.mxu0 %v79
      %314 = vmatpush1.msra.mxu0 %v78
      %315 = vmatprep.subr.mxu0 %v81
      %316 = vmatpush1.msra.mxu0 %v80
      %317 = vmatprep.subr.mxu0 %v83
      %318 = vmatpush1.msra.mxu0 %v82
      %319 = vmatprep.subr.mxu0 %v85
      %320 = vmatpush1.msra.mxu0 %v84
      %321 = vmatprep.subr.mxu0 %v87
      %322 = vmatpush1.msra.mxu0 %v86
      %323 = vmatprep.subr.mxu0 %v89
      %324 = vmatpush1.msra.mxu0 %v88
      %325 = vmatprep.subr.mxu0 %v91
      %326 = vmatpush1.msra.mxu0 %v90
      %327 = vmatprep.subr.mxu0 %v93
      %328 = vmatpush1.msra.mxu0 %v92
      %329 = vmatprep.subr.mxu0 %v95
      %330 = vmatpush1.msra.mxu0 %v94
      %331 = vmatprep.subr.mxu0 %v97
      %332 = vmatpush1.msra.mxu0 %v96
      %333 = vmatprep.subr.mxu0 %v99
      %334 = vmatpush1.msra.mxu0 %v98
      %335 = vmatprep.subr.mxu0 %v101
      %336 = vmatpush1.msra.mxu0 %v100
      %337 = vmatprep.subr.mxu0 %v103
      %338 = vmatpush1.msra.mxu0 %v102
      %339 = vmatprep.subr.mxu0 %v105
      %340 = vmatpush1.msra.mxu0 %v104
      %341 = vmatprep.subr.mxu0 %v107
      %342 = vmatpush1.msra.mxu0 %v106
      %343 = vmatprep.subr.mxu0 %v109
      %344 = vmatpush1.msra.mxu0 %v108
      %345 = vmatprep.subr.mxu0 %v111
      %346 = vmatpush1.msra.mxu0 %v110
      %347 = vmatprep.subr.mxu0 %v113
      %348 = vmatpush1.msra.mxu0 %v112
      %349 = vmatprep.subr.mxu0 %v115
      %350 = vmatpush1.msra.mxu0 %v114
      %351 = vmatprep.subr.mxu0 %v117
      %352 = vmatpush1.msra.mxu0 %v116
      %353 = vmatprep.subr.mxu0 %v119
      %354 = vmatpush1.msra.mxu0 %v118
      %355 = vmatprep.subr.mxu0 %v121
      %356 = vmatpush1.msra.mxu0 %v120
      %357 = vmatprep.subr.mxu0 %v123
      %358 = vmatpush1.msra.mxu0 %v122
      %359 = vmatprep.subr.mxu0 %v125
      %360 = vmatpush1.msra.mxu0 %v124
      %361 = vmatprep.subr.mxu0 %v127
      %362 = vmatpush1.msra.mxu0 %v126
      %363 = vmatprep.subr.mxu0 %v129
      %364 = vmatpush1.msra.mxu0 %v128
      %365 = vmatprep.subr.mxu0 %v131
      %366 = vmatpush1.msra.mxu0 %v130
      %367 = vmatprep.subr.mxu0 %v133
      %368 = vmatpush1.msra.mxu0 %v132
      %369 = vmatprep.subr.mxu0 %v135
      %370 = vmatpush1.msra.mxu0 %v134
      %371 = vmatprep.subr.mxu0 %v137
      %372 = vmatpush1.msra.mxu0 %v136
      %373 = vmatprep.mubr.f32.mxu0 %v308
      %374 = vmatmul.mubr.f32.gmra.mrb[0].mxu0 %v307
      %v375 = vpop.f32.mrb[0].mxu0
      %v376 = vadd.f32 1e-08, %v375
      %v377 = vpop.f32.mrb[0].mxu0
      %v378 = vadd.f32 1e-08, %v377
      %379 = vdwg.mxu0
      %v380 = vrcp.pop %v376
      %v381 = vmul.f32 %v61, %v380
      %v382 = vrcp.pop %v378
      %v383 = vmul.f32 %v62, %v382
      %384 = vmatprep.subr.mxu0 %v75
      %385 = vmatpush1.msra.mxu0 %v74
      %386 = vmatprep.subr.mxu0 %v77
      %387 = vmatpush1.msra.mxu0 %v76
      %388 = vmatprep.subr.mxu0 %v79
      %389 = vmatpush1.msra.mxu0 %v78
      %390 = vmatprep.subr.mxu0 %v81
      %391 = vmatpush1.msra.mxu0 %v80
      %392 = vmatprep.subr.mxu0 %v83
      %393 = vmatpush1.msra.mxu0 %v82
      %394 = vmatprep.subr.mxu0 %v85
      %395 = vmatpush1.msra.mxu0 %v84
      %396 = vmatprep.subr.mxu0 %v87
      %397 = vmatpush1.msra.mxu0 %v86
      %398 = vmatprep.subr.mxu0 %v89
      %399 = vmatpush1.msra.mxu0 %v88
      %400 = vmatprep.subr.mxu0 %v91
      %401 = vmatpush1.msra.mxu0 %v90
      %402 = vmatprep.subr.mxu0 %v93
      %403 = vmatpush1.msra.mxu0 %v92
      %404 = vmatprep.subr.mxu0 %v95
      %405 = vmatpush1.msra.mxu0 %v94
      %406 = vmatprep.subr.mxu0 %v97
      %407 = vmatpush1.msra.mxu0 %v96
      %408 = vmatprep.subr.mxu0 %v99
      %409 = vmatpush1.msra.mxu0 %v98
      %410 = vmatprep.subr.mxu0 %v101
      %411 = vmatpush1.msra.mxu0 %v100
      %412 = vmatprep.subr.mxu0 %v103
      %413 = vmatpush1.msra.mxu0 %v102
      %414 = vmatprep.subr.mxu0 %v105
      %415 = vmatpush1.msra.mxu0 %v104
      %416 = vmatprep.subr.mxu0 %v107
      %417 = vmatpush1.msra.mxu0 %v106
      %418 = vmatprep.subr.mxu0 %v109
      %419 = vmatpush1.msra.mxu0 %v108
      %420 = vmatprep.subr.mxu0 %v111
      %421 = vmatpush1.msra.mxu0 %v110
      %422 = vmatprep.subr.mxu0 %v113
      %423 = vmatpush1.msra.mxu0 %v112
      %424 = vmatprep.subr.mxu0 %v115
      %425 = vmatpush1.msra.mxu0 %v114
      %426 = vmatprep.subr.mxu0 %v117
      %427 = vmatpush1.msra.mxu0 %v116
      %428 = vmatprep.subr.mxu0 %v119
      %429 = vmatpush1.msra.mxu0 %v118
      %430 = vmatprep.subr.mxu0 %v121
      %431 = vmatpush1.msra.mxu0 %v120
      %432 = vmatprep.subr.mxu0 %v123
      %433 = vmatpush1.msra.mxu0 %v122
      %434 = vmatprep.subr.mxu0 %v125
      %435 = vmatpush1.msra.mxu0 %v124
      %436 = vmatprep.subr.mxu0 %v127
      %437 = vmatpush1.msra.mxu0 %v126
      %438 = vmatprep.subr.mxu0 %v129
      %439 = vmatpush1.msra.mxu0 %v128
      %440 = vmatprep.subr.mxu0 %v131
      %441 = vmatpush1.msra.mxu0 %v130
      %442 = vmatprep.subr.mxu0 %v133
      %443 = vmatpush1.msra.mxu0 %v132
      %444 = vmatprep.subr.mxu0 %v135
      %445 = vmatpush1.msra.mxu0 %v134
      %446 = vmatprep.subr.mxu0 %v137
      %447 = vmatpush1.msra.mxu0 %v136
      %448 = vmatprep.mubr.f32.mxu0 %v383
      %449 = vmatmul.mubr.f32.gmra.mrb[0].mxu0 %v381
      %v450 = vpop.f32.mrb[0].mxu0
      %v451 = vadd.f32 1e-08, %v450
      %v452 = vpop.f32.mrb[0].mxu0
      %v453 = vadd.f32 1e-08, %v452
      %454 = vdwg.mxu0
      %v455 = vrcp.pop %v451
      %v456 = vmul.f32 %v63, %v455
      %v457 = vrcp.pop %v453
      %v458 = vmul.f32 %v64, %v457
      %s459 = sadd.s32 %s139, 1
      %p460 = scmp.lt.s32.totalorder %s459, 50
      %s461 = scalar_select %p460, 1, 0
      %v462 = vstv %s461
      %vm463 = vcmp.eq.s32.totalorder %v462, 1
      %v464 = vsel %vm463, %v381, %v305
      %v465 = vsel %vm463, %v383, %v306
      %v466 = vsel %vm463, %v456, %v307
      %v467 = vsel %vm463, %v458, %v308
      %468 = vmatprep.subr.mxu0 %v75
      %469 = vmatpush1.msra.mxu0 %v74
      %470 = vmatprep.subr.mxu0 %v77
      %471 = vmatpush1.msra.mxu0 %v76
      %472 = vmatprep.subr.mxu0 %v79
      %473 = vmatpush1.msra.mxu0 %v78
      %474 = vmatprep.subr.mxu0 %v81
      %475 = vmatpush1.msra.mxu0 %v80
      %476 = vmatprep.subr.mxu0 %v83
      %477 = vmatpush1.msra.mxu0 %v82
      %478 = vmatprep.subr.mxu0 %v85
      %479 = vmatpush1.msra.mxu0 %v84
      %480 = vmatprep.subr.mxu0 %v87
      %481 = vmatpush1.msra.mxu0 %v86
      %482 = vmatprep.subr.mxu0 %v89
      %483 = vmatpush1.msra.mxu0 %v88
      %484 = vmatprep.subr.mxu0 %v91
      %485 = vmatpush1.msra.mxu0 %v90
      %486 = vmatprep.subr.mxu0 %v93
      %487 = vmatpush1.msra.mxu0 %v92
      %488 = vmatprep.subr.mxu0 %v95
      %489 = vmatpush1.msra.mxu0 %v94
      %490 = vmatprep.subr.mxu0 %v97
      %491 = vmatpush1.msra.mxu0 %v96
      %492 = vmatprep.subr.mxu0 %v99
      %493 = vmatpush1.msra.mxu0 %v98
      %494 = vmatprep.subr.mxu0 %v101
      %495 = vmatpush1.msra.mxu0 %v100
      %496 = vmatprep.subr.mxu0 %v103
      %497 = vmatpush1.msra.mxu0 %v102
      %498 = vmatprep.subr.mxu0 %v105
      %499 = vmatpush1.msra.mxu0 %v104
      %500 = vmatprep.subr.mxu0 %v107
      %501 = vmatpush1.msra.mxu0 %v106
      %502 = vmatprep.subr.mxu0 %v109
      %503 = vmatpush1.msra.mxu0 %v108
      %504 = vmatprep.subr.mxu0 %v111
      %505 = vmatpush1.msra.mxu0 %v110
      %506 = vmatprep.subr.mxu0 %v113
      %507 = vmatpush1.msra.mxu0 %v112
      %508 = vmatprep.subr.mxu0 %v115
      %509 = vmatpush1.msra.mxu0 %v114
      %510 = vmatprep.subr.mxu0 %v117
      %511 = vmatpush1.msra.mxu0 %v116
      %512 = vmatprep.subr.mxu0 %v119
      %513 = vmatpush1.msra.mxu0 %v118
      %514 = vmatprep.subr.mxu0 %v121
      %515 = vmatpush1.msra.mxu0 %v120
      %516 = vmatprep.subr.mxu0 %v123
      %517 = vmatpush1.msra.mxu0 %v122
      %518 = vmatprep.subr.mxu0 %v125
      %519 = vmatpush1.msra.mxu0 %v124
      %520 = vmatprep.subr.mxu0 %v127
      %521 = vmatpush1.msra.mxu0 %v126
      %522 = vmatprep.subr.mxu0 %v129
      %523 = vmatpush1.msra.mxu0 %v128
      %524 = vmatprep.subr.mxu0 %v131
      %525 = vmatpush1.msra.mxu0 %v130
      %526 = vmatprep.subr.mxu0 %v133
      %527 = vmatpush1.msra.mxu0 %v132
      %528 = vmatprep.subr.mxu0 %v135
      %529 = vmatpush1.msra.mxu0 %v134
      %530 = vmatprep.subr.mxu0 %v137
      %531 = vmatpush1.msra.mxu0 %v136
      %532 = vmatprep.mubr.f32.mxu0 %v467
      %533 = vmatmul.mubr.f32.gmra.mrb[0].mxu0 %v466
      %v534 = vpop.f32.mrb[0].mxu0
      %v535 = vadd.f32 1e-08, %v534
      %v536 = vpop.f32.mrb[0].mxu0
      %v537 = vadd.f32 1e-08, %v536
      %538 = vdwg.mxu0
      %v539 = vrcp.pop %v535
      %v540 = vmul.f32 %v61, %v539
      %v541 = vrcp.pop %v537
      %v542 = vmul.f32 %v62, %v541
      %543 = vmatprep.subr.mxu0 %v75
      %544 = vmatpush1.msra.mxu0 %v74
      %545 = vmatprep.subr.mxu0 %v77
      %546 = vmatpush1.msra.mxu0 %v76
      %547 = vmatprep.subr.mxu0 %v79
      %548 = vmatpush1.msra.mxu0 %v78
      %549 = vmatprep.subr.mxu0 %v81
      %550 = vmatpush1.msra.mxu0 %v80
      %551 = vmatprep.subr.mxu0 %v83
      %552 = vmatpush1.msra.mxu0 %v82
      %553 = vmatprep.subr.mxu0 %v85
      %554 = vmatpush1.msra.mxu0 %v84
      %555 = vmatprep.subr.mxu0 %v87
      %556 = vmatpush1.msra.mxu0 %v86
      %557 = vmatprep.subr.mxu0 %v89
      %558 = vmatpush1.msra.mxu0 %v88
      %559 = vmatprep.subr.mxu0 %v91
      %560 = vmatpush1.msra.mxu0 %v90
      %561 = vmatprep.subr.mxu0 %v93
      %562 = vmatpush1.msra.mxu0 %v92
      %563 = vmatprep.subr.mxu0 %v95
      %564 = vmatpush1.msra.mxu0 %v94
      %565 = vmatprep.subr.mxu0 %v97
      %566 = vmatpush1.msra.mxu0 %v96
      %567 = vmatprep.subr.mxu0 %v99
      %568 = vmatpush1.msra.mxu0 %v98
      %569 = vmatprep.subr.mxu0 %v101
      %570 = vmatpush1.msra.mxu0 %v100
      %571 = vmatprep.subr.mxu0 %v103
      %572 = vmatpush1.msra.mxu0 %v102
      %573 = vmatprep.subr.mxu0 %v105
      %574 = vmatpush1.msra.mxu0 %v104
      %575 = vmatprep.subr.mxu0 %v107
      %576 = vmatpush1.msra.mxu0 %v106
      %577 = vmatprep.subr.mxu0 %v109
      %578 = vmatpush1.msra.mxu0 %v108
      %579 = vmatprep.subr.mxu0 %v111
      %580 = vmatpush1.msra.mxu0 %v110
      %581 = vmatprep.subr.mxu0 %v113
      %582 = vmatpush1.msra.mxu0 %v112
      %583 = vmatprep.subr.mxu0 %v115
      %584 = vmatpush1.msra.mxu0 %v114
      %585 = vmatprep.subr.mxu0 %v117
      %586 = vmatpush1.msra.mxu0 %v116
      %587 = vmatprep.subr.mxu0 %v119
      %588 = vmatpush1.msra.mxu0 %v118
      %589 = vmatprep.subr.mxu0 %v121
      %590 = vmatpush1.msra.mxu0 %v120
      %591 = vmatprep.subr.mxu0 %v123
      %592 = vmatpush1.msra.mxu0 %v122
      %593 = vmatprep.subr.mxu0 %v125
      %594 = vmatpush1.msra.mxu0 %v124
      %595 = vmatprep.subr.mxu0 %v127
      %596 = vmatpush1.msra.mxu0 %v126
      %597 = vmatprep.subr.mxu0 %v129
      %598 = vmatpush1.msra.mxu0 %v128
      %599 = vmatprep.subr.mxu0 %v131
      %600 = vmatpush1.msra.mxu0 %v130
      %601 = vmatprep.subr.mxu0 %v133
      %602 = vmatpush1.msra.mxu0 %v132
      %603 = vmatprep.subr.mxu0 %v135
      %604 = vmatpush1.msra.mxu0 %v134
      %605 = vmatprep.subr.mxu0 %v137
      %606 = vmatpush1.msra.mxu0 %v136
      %607 = vmatprep.mubr.f32.mxu0 %v542
      %608 = vmatmul.mubr.f32.gmra.mrb[0].mxu0 %v540
      %v609 = vpop.f32.mrb[0].mxu0
      %v610 = vadd.f32 1e-08, %v609
      %v611 = vpop.f32.mrb[0].mxu0
      %v612 = vadd.f32 1e-08, %v611
      %613 = vdwg.mxu0
      %v614 = vrcp.pop %v610
      %v615 = vmul.f32 %v63, %v614
      %v616 = vrcp.pop %v612
      %v617 = vmul.f32 %v64, %v616
      %s618 = sadd.s32 %s139, 2
      %p619 = scmp.lt.s32.totalorder %s618, 50
      %s620 = scalar_select %p619, 1, 0
      %v621 = vstv %s620
      %vm622 = vcmp.eq.s32.totalorder %v621, 1
      %v623 = vsel %vm622, %v540, %v464
      %v624 = vsel %vm622, %v542, %v465
      %v625 = vsel %vm622, %v615, %v466
      %v626 = vsel %vm622, %v617, %v467
      %627 = vmatprep.subr.mxu0 %v75
      %628 = vmatpush1.msra.mxu0 %v74
      %629 = vmatprep.subr.mxu0 %v77
      %630 = vmatpush1.msra.mxu0 %v76
      %631 = vmatprep.subr.mxu0 %v79
      %632 = vmatpush1.msra.mxu0 %v78
      %633 = vmatprep.subr.mxu0 %v81
      %634 = vmatpush1.msra.mxu0 %v80
      %635 = vmatprep.subr.mxu0 %v83
      %636 = vmatpush1.msra.mxu0 %v82
      %637 = vmatprep.subr.mxu0 %v85
      %638 = vmatpush1.msra.mxu0 %v84
      %639 = vmatprep.subr.mxu0 %v87
      %640 = vmatpush1.msra.mxu0 %v86
      %641 = vmatprep.subr.mxu0 %v89
      %642 = vmatpush1.msra.mxu0 %v88
      %643 = vmatprep.subr.mxu0 %v91
      %644 = vmatpush1.msra.mxu0 %v90
      %645 = vmatprep.subr.mxu0 %v93
      %646 = vmatpush1.msra.mxu0 %v92
      %647 = vmatprep.subr.mxu0 %v95
      %648 = vmatpush1.msra.mxu0 %v94
      %649 = vmatprep.subr.mxu0 %v97
      %650 = vmatpush1.msra.mxu0 %v96
      %651 = vmatprep.subr.mxu0 %v99
      %652 = vmatpush1.msra.mxu0 %v98
      %653 = vmatprep.subr.mxu0 %v101
      %654 = vmatpush1.msra.mxu0 %v100
      %655 = vmatprep.subr.mxu0 %v103
      %656 = vmatpush1.msra.mxu0 %v102
      %657 = vmatprep.subr.mxu0 %v105
      %658 = vmatpush1.msra.mxu0 %v104
      %659 = vmatprep.subr.mxu0 %v107
      %660 = vmatpush1.msra.mxu0 %v106
      %661 = vmatprep.subr.mxu0 %v109
      %662 = vmatpush1.msra.mxu0 %v108
      %663 = vmatprep.subr.mxu0 %v111
      %664 = vmatpush1.msra.mxu0 %v110
      %665 = vmatprep.subr.mxu0 %v113
      %666 = vmatpush1.msra.mxu0 %v112
      %667 = vmatprep.subr.mxu0 %v115
      %668 = vmatpush1.msra.mxu0 %v114
      %669 = vmatprep.subr.mxu0 %v117
      %670 = vmatpush1.msra.mxu0 %v116
      %671 = vmatprep.subr.mxu0 %v119
      %672 = vmatpush1.msra.mxu0 %v118
      %673 = vmatprep.subr.mxu0 %v121
      %674 = vmatpush1.msra.mxu0 %v120
      %675 = vmatprep.subr.mxu0 %v123
      %676 = vmatpush1.msra.mxu0 %v122
      %677 = vmatprep.subr.mxu0 %v125
      %678 = vmatpush1.msra.mxu0 %v124
      %679 = vmatprep.subr.mxu0 %v127
      %680 = vmatpush1.msra.mxu0 %v126
      %681 = vmatprep.subr.mxu0 %v129
      %682 = vmatpush1.msra.mxu0 %v128
      %683 = vmatprep.subr.mxu0 %v131
      %684 = vmatpush1.msra.mxu0 %v130
      %685 = vmatprep.subr.mxu0 %v133
      %686 = vmatpush1.msra.mxu0 %v132
      %687 = vmatprep.subr.mxu0 %v135
      %688 = vmatpush1.msra.mxu0 %v134
      %689 = vmatprep.subr.mxu0 %v137
      %690 = vmatpush1.msra.mxu0 %v136
      %691 = vmatprep.mubr.f32.mxu0 %v626
      %692 = vmatmul.mubr.f32.gmra.mrb[0].mxu0 %v625
      %v693 = vpop.f32.mrb[0].mxu0
      %v694 = vadd.f32 1e-08, %v693
      %v695 = vpop.f32.mrb[0].mxu0
      %v696 = vadd.f32 1e-08, %v695
      %697 = vdwg.mxu0
      %v698 = vrcp.pop %v694
      %v699 = vmul.f32 %v61, %v698
      %v700 = vrcp.pop %v696
      %v701 = vmul.f32 %v62, %v700
      %702 = vmatprep.subr.mxu0 %v75
      %703 = vmatpush1.msra.mxu0 %v74
      %704 = vmatprep.subr.mxu0 %v77
      %705 = vmatpush1.msra.mxu0 %v76
      %706 = vmatprep.subr.mxu0 %v79
      %707 = vmatpush1.msra.mxu0 %v78
      %708 = vmatprep.subr.mxu0 %v81
      %709 = vmatpush1.msra.mxu0 %v80
      %710 = vmatprep.subr.mxu0 %v83
      %711 = vmatpush1.msra.mxu0 %v82
      %712 = vmatprep.subr.mxu0 %v85
      %713 = vmatpush1.msra.mxu0 %v84
      %714 = vmatprep.subr.mxu0 %v87
      %715 = vmatpush1.msra.mxu0 %v86
      %716 = vmatprep.subr.mxu0 %v89
      %717 = vmatpush1.msra.mxu0 %v88
      %718 = vmatprep.subr.mxu0 %v91
      %719 = vmatpush1.msra.mxu0 %v90
      %720 = vmatprep.subr.mxu0 %v93
      %721 = vmatpush1.msra.mxu0 %v92
      %722 = vmatprep.subr.mxu0 %v95
      %723 = vmatpush1.msra.mxu0 %v94
      %724 = vmatprep.subr.mxu0 %v97
      %725 = vmatpush1.msra.mxu0 %v96
      %726 = vmatprep.subr.mxu0 %v99
      %727 = vmatpush1.msra.mxu0 %v98
      %728 = vmatprep.subr.mxu0 %v101
      %729 = vmatpush1.msra.mxu0 %v100
      %730 = vmatprep.subr.mxu0 %v103
      %731 = vmatpush1.msra.mxu0 %v102
      %732 = vmatprep.subr.mxu0 %v105
      %733 = vmatpush1.msra.mxu0 %v104
      %734 = vmatprep.subr.mxu0 %v107
      %735 = vmatpush1.msra.mxu0 %v106
      %736 = vmatprep.subr.mxu0 %v109
      %737 = vmatpush1.msra.mxu0 %v108
      %738 = vmatprep.subr.mxu0 %v111
      %739 = vmatpush1.msra.mxu0 %v110
      %740 = vmatprep.subr.mxu0 %v113
      %741 = vmatpush1.msra.mxu0 %v112
      %742 = vmatprep.subr.mxu0 %v115
      %743 = vmatpush1.msra.mxu0 %v114
      %744 = vmatprep.subr.mxu0 %v117
      %745 = vmatpush1.msra.mxu0 %v116
      %746 = vmatprep.subr.mxu0 %v119
      %747 = vmatpush1.msra.mxu0 %v118
      %748 = vmatprep.subr.mxu0 %v121
      %749 = vmatpush1.msra.mxu0 %v120
      %750 = vmatprep.subr.mxu0 %v123
      %751 = vmatpush1.msra.mxu0 %v122
      %752 = vmatprep.subr.mxu0 %v125
      %753 = vmatpush1.msra.mxu0 %v124
      %754 = vmatprep.subr.mxu0 %v127
      %755 = vmatpush1.msra.mxu0 %v126
      %756 = vmatprep.subr.mxu0 %v129
      %757 = vmatpush1.msra.mxu0 %v128
      %758 = vmatprep.subr.mxu0 %v131
      %759 = vmatpush1.msra.mxu0 %v130
      %760 = vmatprep.subr.mxu0 %v133
      %761 = vmatpush1.msra.mxu0 %v132
      %762 = vmatprep.subr.mxu0 %v135
      %763 = vmatpush1.msra.mxu0 %v134
      %764 = vmatprep.subr.mxu0 %v137
      %765 = vmatpush1.msra.mxu0 %v136
      %766 = vmatprep.mubr.f32.mxu0 %v701
      %767 = vmatmul.mubr.f32.gmra.mrb[0].mxu0 %v699
      %v768 = vpop.f32.mrb[0].mxu0
      %v769 = vadd.f32 1e-08, %v768
      %v770 = vpop.f32.mrb[0].mxu0
      %v771 = vadd.f32 1e-08, %v770
      %772 = vdwg.mxu0
      %v773 = vrcp.pop %v769
      %v774 = vmul.f32 %v63, %v773
      %v775 = vrcp.pop %v771
      %v776 = vmul.f32 %v64, %v775
      %s777 = sadd.s32 %s139, 3
      %p778 = scmp.lt.s32.totalorder %s777, 50
      %s779 = scalar_select %p778, 1, 0
      %v780 = vstv %s779
      %vm781 = vcmp.eq.s32.totalorder %v780, 1
      %v782 = vsel %vm781, %v699, %v623
      %v783 = vsel %vm781, %v701, %v624
      %v784 = vsel %vm781, %v774, %v625
      %v785 = vsel %vm781, %v776, %v626
      %v786 = vsub.f32 %v782, %v623
      %v787 = vsub.f32 %v783, %v624
      %v788 = vand.u32 2147483647, %v786
      %v789 = vand.u32 2147483647, %v787
      %v790 = vsub.f32 %v784, %v625
      %v791 = vsub.f32 %v785, %v626
      %v792 = vand.u32 2147483647, %v790
      %v793 = vand.u32 2147483647, %v791
      %v794 = vadd.f32 %v788, %v792
      %v795 = vadd.f32 %v789, %v793
      %v796 = vmul.f32 %v794, %v69
      %v797 = vmul.f32 %v795, %v69
      %s798 = sadd.s32 %s139, 4
      %v799 = vadd.f32 %v796, %v797
      %800 = vadd.xlane.f32.xlu0 %v799
      %v801 = vpop.xlane.xlu0 %800
      %v802 = vrot.slane %v801, 4
      %v803 = vadd.f32 %v801, %v802
      %v804 = vrot.slane %v803, 2
      %v805 = vadd.f32 %v803, %v804
      %v806 = vrot.slane %v805, 1
      %v807 = vadd.f32 %v805, %v806
      %s808 = vtos %v807
    $region30: #{_run.1} parent=1 // loop_footer
      _
    $region31: #{_run.1} parent=1 // loop_footer_branch
      %138 = sbr.rel target = $region27
    $region32: #{_run.1} parent=1 // loop_exit
      _
    %s809 = sshll.u32 %s71, 4
    %810 = dma.done %s49, %s809
    %v811 = vld [vmem:[#allocation3] sm:$0xff]
    %v812 = vld [vmem:[#allocation3 + $0x8] sm:$0xff]
    %v813 = vld [vmem:[#allocation3 + $0x10] sm:$0xff]
    %v814 = vld [vmem:[#allocation3 + $0x18] sm:$0xff]
    %v815 = vld [vmem:[#allocation3 + $0x20] sm:$0xff]
    %v816 = vld [vmem:[#allocation3 + $0x28] sm:$0xff]
    %v817 = vld [vmem:[#allocation3 + $0x30] sm:$0xff]
    %v818 = vld [vmem:[#allocation3 + $0x38] sm:$0xff]
    %v819 = vld [vmem:[#allocation3 + $0x40] sm:$0xff]
    %v820 = vld [vmem:[#allocation3 + $0x48] sm:$0xff]
    %v821 = vld [vmem:[#allocation3 + $0x50] sm:$0xff]
    %v822 = vld [vmem:[#allocation3 + $0x58] sm:$0xff]
    %v823 = vld [vmem:[#allocation3 + $0x60] sm:$0xff]
    %v824 = vld [vmem:[#allocation3 + $0x68] sm:$0xff]
    %v825 = vld [vmem:[#allocation3 + $0x70] sm:$0xff]
    %v826 = vld [vmem:[#allocation3 + $0x78] sm:$0xff]
    %v827 = vld [vmem:[#allocation3 + $0x80] sm:$0xff]
    %v828 = vld [vmem:[#allocation3 + $0x88] sm:$0xff]
    %v829 = vld [vmem:[#allocation3 + $0x90] sm:$0xff]
    %v830 = vld [vmem:[#allocation3 + $0x98] sm:$0xff]
    %v831 = vld [vmem:[#allocation3 + $0xa0] sm:$0xff]
    %v832 = vld [vmem:[#allocation3 + $0xa8] sm:$0xff]
    %v833 = vld [vmem:[#allocation3 + $0xb0] sm:$0xff]
    %v834 = vld [vmem:[#allocation3 + $0xb8] sm:$0xff]
    %v835 = vld [vmem:[#allocation3 + $0xc0] sm:$0xff]
    %v836 = vld [vmem:[#allocation3 + $0xc8] sm:$0xff]
    %v837 = vld [vmem:[#allocation3 + $0xd0] sm:$0xff]
    %v838 = vld [vmem:[#allocation3 + $0xd8] sm:$0xff]
    %v839 = vld [vmem:[#allocation3 + $0xe0] sm:$0xff]
    %v840 = vld [vmem:[#allocation3 + $0xe8] sm:$0xff]
    %v841 = vld [vmem:[#allocation3 + $0xf0] sm:$0xff]
    %v842 = vld [vmem:[#allocation3 + $0xf8] sm:$0xff]
    %v843 = vld [vmem:[#allocation3 + $0x100] sm:$0xff]
    %v844 = vld [vmem:[#allocation3 + $0x108] sm:$0xff]
    %v845 = vld [vmem:[#allocation3 + $0x110] sm:$0xff]
    %v846 = vld [vmem:[#allocation3 + $0x118] sm:$0xff]
    %v847 = vld [vmem:[#allocation3 + $0x120] sm:$0xff]
    %v848 = vld [vmem:[#allocation3 + $0x128] sm:$0xff]
    %v849 = vld [vmem:[#allocation3 + $0x130] sm:$0xff]
    %v850 = vld [vmem:[#allocation3 + $0x138] sm:$0xff]
    %v851 = vld [vmem:[#allocation3 + $0x140] sm:$0xff]
    %v852 = vld [vmem:[#allocation3 + $0x148] sm:$0xff]
    %v853 = vld [vmem:[#allocation3 + $0x150] sm:$0xff]
    %v854 = vld [vmem:[#allocation3 + $0x158] sm:$0xff]
    %v855 = vld [vmem:[#allocation3 + $0x160] sm:$0xff]
    %v856 = vld [vmem:[#allocation3 + $0x168] sm:$0xff]
    %v857 = vld [vmem:[#allocation3 + $0x170] sm:$0xff]
    %v858 = vld [vmem:[#allocation3 + $0x178] sm:$0xff]
    %v859 = vld [vmem:[#allocation3 + $0x180] sm:$0xff]
    %v860 = vld [vmem:[#allocation3 + $0x188] sm:$0xff]
    %v861 = vld [vmem:[#allocation3 + $0x190] sm:$0xff]
    %v862 = vld [vmem:[#allocation3 + $0x198] sm:$0xff]
    %v863 = vld [vmem:[#allocation3 + $0x1a0] sm:$0xff]
    %v864 = vld [vmem:[#allocation3 + $0x1a8] sm:$0xff]
    %v865 = vld [vmem:[#allocation3 + $0x1b0] sm:$0xff]
    %v866 = vld [vmem:[#allocation3 + $0x1b8] sm:$0xff]
    %v867 = vld [vmem:[#allocation3 + $0x1c0] sm:$0xff]
    %v868 = vld [vmem:[#allocation3 + $0x1c8] sm:$0xff]
    %v869 = vld [vmem:[#allocation3 + $0x1d0] sm:$0xff]
    %v870 = vld [vmem:[#allocation3 + $0x1d8] sm:$0xff]
    %v871 = vld [vmem:[#allocation3 + $0x1e0] sm:$0xff]
    %v872 = vld [vmem:[#allocation3 + $0x1e8] sm:$0xff]
    %v873 = vld [vmem:[#allocation3 + $0x1f0] sm:$0xff]
    %v874 = vld [vmem:[#allocation3 + $0x1f8] sm:$0xff]
    %v875 = vmul.f32 %v140, %v69
    %v876 = vmul.f32 %v141, %v69
    %877 = vmatprep.subr.mxu0 %v812
    %878 = vmatpush1.msra.mxu0 %v811
    %879 = vmatprep.subr.mxu0 %v814
    %880 = vmatpush1.msra.mxu0 %v813
    %881 = vmatprep.subr.mxu0 %v816
    %882 = vmatpush1.msra.mxu0 %v815
    %883 = vmatprep.subr.mxu0 %v818
    %884 = vmatpush1.msra.mxu0 %v817
    %885 = vmatprep.subr.mxu0 %v820
    %886 = vmatpush1.msra.mxu0 %v819
    %887 = vmatprep.subr.mxu0 %v822
    %888 = vmatpush1.msra.mxu0 %v821
    %889 = vmatprep.subr.mxu0 %v824
    %890 = vmatpush1.msra.mxu0 %v823
    %891 = vmatprep.subr.mxu0 %v826
    %892 = vmatpush1.msra.mxu0 %v825
    %893 = vmatprep.subr.mxu0 %v828
    %894 = vmatpush1.msra.mxu0 %v827
    %895 = vmatprep.subr.mxu0 %v830
    %896 = vmatpush1.msra.mxu0 %v829
    %897 = vmatprep.subr.mxu0 %v832
    %898 = vmatpush1.msra.mxu0 %v831
    %899 = vmatprep.subr.mxu0 %v834
    %900 = vmatpush1.msra.mxu0 %v833
    %901 = vmatprep.subr.mxu0 %v836
    %902 = vmatpush1.msra.mxu0 %v835
    %903 = vmatprep.subr.mxu0 %v838
    %904 = vmatpush1.msra.mxu0 %v837
    %905 = vmatprep.subr.mxu0 %v840
    %906 = vmatpush1.msra.mxu0 %v839
    %907 = vmatprep.subr.mxu0 %v842
    %908 = vmatpush1.msra.mxu0 %v841
    %909 = vmatprep.subr.mxu0 %v844
    %910 = vmatpush1.msra.mxu0 %v843
    %911 = vmatprep.subr.mxu0 %v846
    %912 = vmatpush1.msra.mxu0 %v845
    %913 = vmatprep.subr.mxu0 %v848
    %914 = vmatpush1.msra.mxu0 %v847
    %915 = vmatprep.subr.mxu0 %v850
    %916 = vmatpush1.msra.mxu0 %v849
    %917 = vmatprep.subr.mxu0 %v852
    %918 = vmatpush1.msra.mxu0 %v851
    %919 = vmatprep.subr.mxu0 %v854
    %920 = vmatpush1.msra.mxu0 %v853
    %921 = vmatprep.subr.mxu0 %v856
    %922 = vmatpush1.msra.mxu0 %v855
    %923 = vmatprep.subr.mxu0 %v858
    %924 = vmatpush1.msra.mxu0 %v857
    %925 = vmatprep.subr.mxu0 %v860
    %926 = vmatpush1.msra.mxu0 %v859
    %927 = vmatprep.subr.mxu0 %v862
    %928 = vmatpush1.msra.mxu0 %v861
    %929 = vmatprep.subr.mxu0 %v864
    %930 = vmatpush1.msra.mxu0 %v863
    %931 = vmatprep.subr.mxu0 %v866
    %932 = vmatpush1.msra.mxu0 %v865
    %933 = vmatprep.subr.mxu0 %v868
    %934 = vmatpush1.msra.mxu0 %v867
    %935 = vmatprep.subr.mxu0 %v870
    %936 = vmatpush1.msra.mxu0 %v869
    %937 = vmatprep.subr.mxu0 %v872
    %938 = vmatpush1.msra.mxu0 %v871
    %939 = vmatprep.subr.mxu0 %v874
    %940 = vmatpush1.msra.mxu0 %v873
    %941 = vmatprep.mubr.f32.mxu0 %v143
    %942 = vmatmul.mubr.f32.gmra.mrb[0].mxu0 %v142
    %v943 = vpop.f32.mrb[0].mxu0
    %v944 = vadd.f32 0.0, %v943
    %v945 = vpop.f32.mrb[0].mxu0
    %v946 = vadd.f32 0.0, %v945
    %947 = vdwg.mxu0
    %v948 = vmul.f32 %v875, %v944
    %v949 = vmul.f32 %v876, %v946
    %v950 = vadd.f32 %v948, %v949
    %951 = vadd.xlane.f32.xlu0 %v950
    %v952 = vpop.xlane.xlu0 %951
    %v953 = vrot.slane %v952, 4
    %v954 = vadd.f32 %v952, %v953
    %v955 = vrot.slane %v954, 2
    %v956 = vadd.f32 %v954, %v955
    %v957 = vrot.slane %v956, 1
    %v958 = vadd.f32 %v956, %v957
    %s959 = vtos %v958
    %v960 = vstv %s959
    %vm961 = vcmask 0
    %962 = vst.msk [vmem:[#allocation10] sm:$0x1] %vm961, %v960
    // Predicated region
    $region33: #{_run.1} parent=1 // pred_check
      _
    $region34: #{_run.1} parent=1 // pred_check_branch
      %964 = sbr.rel (0) target = $region36
    $region35: #{_run.1} parent=1 // pred_region
      %s966 = ssub.s32 16, 16
      %967 = vsyncadd [#allocation7], %s966
      %s969 = sshll.u32 [#allocation10], 4
      %s970 = int_to_ptr.vmem [resolvable:$true] %s969
      %972 = dma.vmem_to_hbm [thread:$0]  %s970, 16, %s4, [#allocation7]
    $region36: #{_run.1} parent=1 // pred_fallthru
      _
    // Predicated region
    $region37: #{_run.1} parent=1 // pred_check
      _
    $region38: #{_run.1} parent=1 // pred_check_branch
      %974 = sbr.rel (0) target = $region40
    $region39: #{_run.1} parent=1 // pred_region
      %975 = dma.done [#allocation7], 16
    $region40: #{_run.1} parent=1 // pred_fallthru
      _
    %976 = vsyncpa [#allocation6], 1
    %977 = vsyncpa [#allocation9], 1
    %978 = vsyncpa [#allocation7], 1
  %979 = vsyncmov [#allocation4]
  %s980 = vpop.sfrf %979
  %p981 = scmp.eq.s32.totalorder %s980, 0
  %p982 = pneg %p981
  %984 = shalt.err (%p982)
  %s985 = scalar_lea.sflag [#allocation4], 1
  %986 = vsyncmov %s985
  %s987 = vpop.sfrf %986
  %p988 = scmp.eq.s32.totalorder %s987, 0
  %p989 = pneg %p988
  %991 = shalt.err (%p989)

</llo_original>
